<compile_context>
chip_gen: v5e
topology: v5e:2x2
jax: 0.10.0
libtpu: 0.0.40
codegen_flags: <defaults>
</compile_context>

<pallas_src>
import jax
import jax.numpy as jnp
from jax.experimental import pallas as pl
from jax.experimental.pallas import tpu as pltpu


def _round_up(x: int, m: int) -> int:
    return (x + m - 1) // m * m


def _pick_tile(dim: int, candidates, align: int) -> int:
    """Pick a tile size for `dim`: full (aligned) dim if small, else the
    candidate (descending preference) that minimizes zero-padding waste."""
    if dim <= candidates[-1]:
        return min(_round_up(dim, align), candidates[-1])
    best_c, best_waste = candidates[0], None
    for c in candidates:
        waste = _round_up(dim, c) - dim
        if best_waste is None or waste < best_waste:
            best_c, best_waste = c, waste
    return best_c


def _pick_tiles(M: int, N: int, K: int):
    tm = _pick_tile(M, (512, 384, 256, 128), 8)     # sublane-aligned
    tn = _pick_tile(N, (512, 384, 256, 128), 128)   # lane-dense output
    tk = _pick_tile(K, (1024, 768, 512, 256, 128), 128)
    return tm, tn, tk


def _pick_bblk(B: int, tm: int, tn: int, tk: int, in_bytes: int) -> int:
    """Largest divisor of B that (a) leaves >= 2 grid steps along the batch
    axis (v7x megacore) and (b) keeps double-buffered block VMEM under budget."""
    if B <= 1:
        return 1

    def vmem(bblk):
        return bblk * (2 * (tm * tk + tk * tn) * in_bytes + 4 * tm * tn * 4)

    cap = max(1, B // 2)
    best = 1
    for d in range(1, cap + 1):
        if B % d == 0 and vmem(d) <= (24 << 20):
            best = d
    return best


def _vmem_limit_bytes(tm, tn, tk, bblk, in_bytes, out_bytes, use_scratch):
    per = bblk * (
        2 * (tm * tk + tk * tn) * in_bytes   # double-buffered w, x
        + 2 * tm * tn * 4                    # double-buffered bias
        + 2 * tm * tn * out_bytes            # double-buffered out
    )
    if use_scratch:
        per += bblk * tm * tn * 4
    # 25% headroom, floor 32 MiB (covers v5e's low default scoped limit),
    # cap 48 MiB (safe margin below v7x's 64 MiB physical VMEM).
    return int(min(max(per * 5 // 4, 32 << 20), 48 << 20))


# --------------------------------------------------------------------------
# Kernels
# --------------------------------------------------------------------------

def _mm_bias_kernel_fused(k_axis: int, batched: bool):
    """f32-output path: o_ref is resident across K (its block index ignores k);
    bias is folded into the k==0 init and partials accumulate in place."""

    def kernel(w_ref, x_ref, b_ref, o_ref):
        k = pl.program_id(k_axis)

        @pl.when(k == 0)
        def _():
            o_ref[...] = b_ref[...].astype(o_ref.dtype)

        if batched:
            o_ref[...] += jnp.einsum(
                "bmk,bkn->bmn", w_ref[...], x_ref[...],
                preferred_element_type=jnp.float32)
        else:
            o_ref[...] += jnp.dot(
                w_ref[...], x_ref[...], preferred_element_type=jnp.float32)

    return kernel


def _mm_bias_kernel_scratch(k_axis: int, batched: bool):
    """Non-f32-output path: accumulate in an f32 VMEM scratch, cast on last k."""

    def kernel(w_ref, x_ref, b_ref, o_ref, acc_ref):
        k = pl.program_id(k_axis)

        @pl.when(k == 0)
        def _():
            acc_ref[...] = b_ref[...].astype(jnp.float32)

        if batched:
            acc_ref[...] += jnp.einsum(
                "bmk,bkn->bmn", w_ref[...], x_ref[...],
                preferred_element_type=jnp.float32)
        else:
            acc_ref[...] += jnp.dot(
                w_ref[...], x_ref[...], preferred_element_type=jnp.float32)

        @pl.when(k == pl.num_programs(k_axis) - 1)
        def _():
            o_ref[...] = acc_ref[...].astype(o_ref.dtype)

    return kernel


# --------------------------------------------------------------------------
# Single-slice T_Layer: out = weights @ dct_x + bias
# --------------------------------------------------------------------------

def make_t_layer(weights: jax.Array, bias: jax.Array, *, use_bf16: bool = False):
    """Build a jitted forward(dct_x) for one T_Layer, with parameter padding
    (and optional bf16 cast of the streamed weights) hoisted to setup time."""
    M, K = weights.shape
    Mb, N = bias.shape
    assert Mb == M, "bias rows must match weight rows"
    out_dtype = jnp.result_type(weights.dtype, bias.dtype)

    tm, tn, tk = _pick_tiles(M, N, K)
    Mp, Np, Kp = _round_up(M, tm), _round_up(N, tn), _round_up(K, tk)

    # Hoisted once-per-layer parameter prep (not re-done every forward).
    w_p = weights if (Mp, Kp) == (M, K) else jnp.pad(
        weights, ((0, Mp - M), (0, Kp - K)))
    b_p = bias if (Mp, Np) == (M, N) else jnp.pad(
        bias, ((0, Mp - M), (0, Np - N)))
    if use_bf16:
        w_p = w_p.astype(jnp.bfloat16)
    in_dtype = w_p.dtype
    in_bytes = jnp.dtype(in_dtype).itemsize
    out_bytes = jnp.dtype(out_dtype).itemsize

    use_scratch = out_dtype != jnp.float32
    kernel = (_mm_bias_kernel_scratch(2, False) if use_scratch
              else _mm_bias_kernel_fused(2, False))
    scratch = [pltpu.VMEM((tm, tn), jnp.float32)] if use_scratch else []

    grid = (Mp // tm, Np // tn, Kp // tk)

    call = pl.pallas_call(
        kernel,
        out_shape=jax.ShapeDtypeStruct((Mp, Np), out_dtype),
        grid_spec=pltpu.PrefetchScalarGridSpec(
            num_scalar_prefetch=0,
            grid=grid,
            in_specs=[
                pl.BlockSpec((tm, tk), lambda i, j, k: (i, k)),
                pl.BlockSpec((tk, tn), lambda i, j, k: (k, j)),
                pl.BlockSpec((tm, tn), lambda i, j, k: (i, j)),
            ],
            out_specs=pl.BlockSpec((tm, tn), lambda i, j, k: (i, j)),
            scratch_shapes=scratch,
        ),
        compiler_params=pltpu.CompilerParams(
            dimension_semantics=("parallel", "parallel", "arbitrary"),
            vmem_limit_bytes=_vmem_limit_bytes(
                tm, tn, tk, 1, in_bytes, out_bytes, use_scratch),
        ),
    )

    x_needs_pad = (Kp, Np) != (K, N)
    out_needs_slice = (Mp, Np) != (M, N)

    @jax.jit
    def forward(dct_x: jax.Array) -> jax.Array:
        assert dct_x.shape == (K, N), "dct_x must be (K, N)"
        x = dct_x.astype(in_dtype)
        if x_needs_pad:
            x = jnp.pad(x, ((0, Kp - K), (0, Np - N)))
        out = call(w_p, x, b_p)
        if out_needs_slice:
            out = out[:M, :N]
        return out

    return forward


# --------------------------------------------------------------------------
# Batched T_Layer: B independent slices fused into one pallas_call,
# with Bblk slices computed per grid step (not one step per slice).
# --------------------------------------------------------------------------

def make_t_layer_batched(weights: jax.Array, bias: jax.Array, *,
                         use_bf16: bool = False):
    """weights: (B, M, K), bias: (B, M, N).  Returns forward(x: (B, K, N))."""
    B, M, K = weights.shape
    Bb, Mb, N = bias.shape
    assert Bb == B and Mb == M
    out_dtype = jnp.result_type(weights.dtype, bias.dtype)

    tm, tn, tk = _pick_tiles(M, N, K)
    Mp, Np, Kp = _round_up(M, tm), _round_up(N, tn), _round_up(K, tk)

    w_p = weights if (Mp, Kp) == (M, K) else jnp.pad(
        weights, ((0, 0), (0, Mp - M), (0, Kp - K)))
    b_p = bias if (Mp, Np) == (M, N) else jnp.pad(
        bias, ((0, 0), (0, Mp - M), (0, Np - N)))
    if use_bf16:
        w_p = w_p.astype(jnp.bfloat16)
    in_dtype = w_p.dtype
    in_bytes = jnp.dtype(in_dtype).itemsize
    out_bytes = jnp.dtype(out_dtype).itemsize

    bblk = _pick_bblk(B, tm, tn, tk, in_bytes)

    use_scratch = out_dtype != jnp.float32
    kernel = (_mm_bias_kernel_scratch(3, True) if use_scratch
              else _mm_bias_kernel_fused(3, True))
    scratch = [pltpu.VMEM((bblk, tm, tn), jnp.float32)] if use_scratch else []

    grid = (B // bblk, Mp // tm, Np // tn, Kp // tk)

    call = pl.pallas_call(
        kernel,
        out_shape=jax.ShapeDtypeStruct((B, Mp, Np), out_dtype),
        grid_spec=pltpu.PrefetchScalarGridSpec(
            num_scalar_prefetch=0,
            grid=grid,
            in_specs=[
                pl.BlockSpec((bblk, tm, tk), lambda b, i, j, k: (b, i, k)),
                pl.BlockSpec((bblk, tk, tn), lambda b, i, j, k: (b, k, j)),
                pl.BlockSpec((bblk, tm, tn), lambda b, i, j, k: (b, i, j)),
            ],
            out_specs=pl.BlockSpec((bblk, tm, tn), lambda b, i, j, k: (b, i, j)),
            scratch_shapes=scratch,
        ),
        compiler_params=pltpu.CompilerParams(
            dimension_semantics=("parallel", "parallel", "parallel", "arbitrary"),
            vmem_limit_bytes=_vmem_limit_bytes(
                tm, tn, tk, bblk, in_bytes, out_bytes, use_scratch),
        ),
    )

    x_needs_pad = (Kp, Np) != (K, N)
    out_needs_slice = (Mp, Np) != (M, N)

    @jax.jit
    def forward(dct_x: jax.Array) -> jax.Array:
        assert dct_x.shape == (B, K, N), "dct_x must be (B, K, N)"
        x = dct_x.astype(in_dtype)
        if x_needs_pad:
            x = jnp.pad(x, ((0, 0), (0, Kp - K), (0, Np - N)))
        out = call(w_p, x, b_p)
        if out_needs_slice:
            out = out[:, :M, :N]
        return out

    return forward


if __name__ == "__main__":
    # Deterministic synthetic parameters / inputs (no checkpoint loading).
    key = jax.random.PRNGKey(0)
    kw, kb, kx, kwb, kbb, kxb = jax.random.split(key, 6)

    # ---- single-slice T_Layer (matches the torch module exactly) ----
    M, K, N = 32, 32, 16
    dct_w = jax.random.normal(kw, (M, K), dtype=jnp.float32)   # self.weights
    dct_b = jax.random.normal(kb, (M, N), dtype=jnp.float32)   # self.bias
    dct_x = jax.random.normal(kx, (K, N), dtype=jnp.float32)   # forward input

    layer = make_t_layer(dct_w, dct_b)
    out = jax.block_until_ready(layer(dct_x))
    ref = dct_w @ dct_x + dct_b
    assert out.shape == (M, N)
    assert jnp.allclose(out, ref, atol=1e-5, rtol=1e-5), "single-slice mismatch"

    # ---- batched: 8 independent transform slices, fused + batch-blocked ----
    B = 8
    wb = jax.random.normal(kwb, (B, M, K), dtype=jnp.float32)
    bb = jax.random.normal(kbb, (B, M, N), dtype=jnp.float32)
    xb = jax.random.normal(kxb, (B, K, N), dtype=jnp.float32)

    batched_layer = make_t_layer_batched(wb, bb)
    out_b = jax.block_until_ready(batched_layer(xb))
    ref_b = jnp.einsum("bmk,bkn->bmn", wb, xb) + bb
    assert out_b.shape == (B, M, N)
    assert jnp.allclose(out_b, ref_b, atol=1e-5, rtol=1e-5), "batched mismatch"

    print("KERNEL_OK")
</pallas_src>

<mosaic_0001>
module attributes {stable_mosaic.version = 11 : i64} {
  func.func @kernel(%arg0: i32, %arg1: i32, %arg2: i32, %arg3: memref<32x128xf32, #tpu.memory_space<vmem>>, %arg4: memref<128x128xf32, #tpu.memory_space<vmem>>, %arg5: memref<32x128xf32, #tpu.memory_space<vmem>>, %arg6: memref<32x128xf32, #tpu.memory_space<vmem>>) attributes {dimension_semantics = [#tpu.dimension_semantics<parallel>, #tpu.dimension_semantics<parallel>, #tpu.dimension_semantics<arbitrary>], iteration_bounds = array<i64: 1, 1, 1>, scalar_prefetch = 0 : i64, scratch_operands = 0 : i64, tpu.core_type = #tpu.core_type<tc>, window_params = [{transform_indices = @transform_0, window_bounds = array<i64: 32, 128>}, {transform_indices = @transform_1, window_bounds = array<i64: 128, 128>}, {transform_indices = @transform_2, window_bounds = array<i64: 32, 128>}, {transform_indices = @transform_3, window_bounds = array<i64: 32, 128>}]} {
    %c0_i32 = arith.constant 0 : i32
    %0 = arith.cmpi eq, %arg2, %c0_i32 : i32
    %1 = arith.extui %0 : i1 to i32
    %c0_i32_0 = arith.constant 0 : i32
    %2 = arith.cmpi ne, %1, %c0_i32_0 : i32
    scf.if %2 {
      %c0_8 = arith.constant 0 : index
      %c0_9 = arith.constant 0 : index
      %9 = vector.load %arg5[%c0_8, %c0_9] : memref<32x128xf32, #tpu.memory_space<vmem>>, vector<32x128xf32>
      %c0_10 = arith.constant 0 : index
      %c0_11 = arith.constant 0 : index
      %10 = vector.load %arg6[%c0_10, %c0_11] : memref<32x128xf32, #tpu.memory_space<vmem>>, vector<32x128xf32>
      tpu.vector_store %arg6[%c0_10, %c0_11], %9 {strides = array<i32>} : memref<32x128xf32, #tpu.memory_space<vmem>>, vector<32x128xf32>,
    } else {
    }
    %c0 = arith.constant 0 : index
    %c0_1 = arith.constant 0 : index
    %3 = vector.load %arg6[%c0, %c0_1] : memref<32x128xf32, #tpu.memory_space<vmem>>, vector<32x128xf32>
    %c0_2 = arith.constant 0 : index
    %c0_3 = arith.constant 0 : index
    %4 = vector.load %arg3[%c0_2, %c0_3] : memref<32x128xf32, #tpu.memory_space<vmem>>, vector<32x128xf32>
    %c0_4 = arith.constant 0 : index
    %c0_5 = arith.constant 0 : index
    %5 = vector.load %arg4[%c0_4, %c0_5] : memref<128x128xf32, #tpu.memory_space<vmem>>, vector<128x128xf32>
    %cst = arith.constant dense<0.000000e+00> : vector<32x128xf32>
    %6 = tpu.matmul %4, %5, %cst {dimension_numbers = #tpu.dot_dimension_numbers<[1], [0], [0], [1], [0, 0, 1, 1], [], []>} : vector<32x128xf32>, vector<128x128xf32>, vector<32x128xf32> -> vector<32x128xf32>
    %7 = arith.addf %3, %6 : vector<32x128xf32>
    %c0_6 = arith.constant 0 : index
    %c0_7 = arith.constant 0 : index
    %8 = vector.load %arg6[%c0_6, %c0_7] : memref<32x128xf32, #tpu.memory_space<vmem>>, vector<32x128xf32>
    tpu.vector_store %arg6[%c0_6, %c0_7], %7 {strides = array<i32>} : memref<32x128xf32, #tpu.memory_space<vmem>>, vector<32x128xf32>,
    return
  }
  func.func @transform_0(%arg0: i32, %arg1: i32, %arg2: i32) -> (i32, i32) {
    %c0_i32 = arith.constant 0 : i32
    return %arg0, %arg2 : i32, i32
  }
  func.func @transform_1(%arg0: i32, %arg1: i32, %arg2: i32) -> (i32, i32) {
    %c0_i32 = arith.constant 0 : i32
    return %arg2, %arg1 : i32, i32
  }
  func.func @transform_2(%arg0: i32, %arg1: i32, %arg2: i32) -> (i32, i32) {
    %c0_i32 = arith.constant 0 : i32
    return %arg0, %arg1 : i32, i32
  }
  func.func @transform_3(%arg0: i32, %arg1: i32, %arg2: i32) -> (i32, i32) {
    %c0_i32 = arith.constant 0 : i32
    return %arg0, %arg1 : i32, i32
  }
}

</mosaic_0001>

<llo_original>
// kernel: forward.1
$region0: #{forward.1}
  #allocation0 [shape = 'u32[]', space=smem, size = 0x4, offset = 0x4, fixed_abs, tag = 'smem constant byte address 0x4 - core index']
  #allocation1 [shape = 'u32[72,128]{1,0:T(1,128)}', space=vmem, size = 0x9000, scoped, tag = 'internal scratch']
  %s0 = inlined_call_operand.vmem [shape: f32[32,128], index: 0, kind: input, shape index: {}]
  %s1 = inlined_call_operand.vmem [shape: f32[128,128], index: 1, kind: input, shape index: {}]
  %s2 = inlined_call_operand.vmem [shape: f32[32,128], index: 2, kind: input, shape index: {}]
  %s3 = inlined_call_operand.vmem [shape: f32[32,128], index: 3, kind: output, shape index: {}]
  %s4 = sld [smem:[#allocation0]]
  $region26: #{forward.1} parent=0
    _
  %s6 = ssub.s32 1, %s4
  %s7 = scalar_select 0, %s6, %s4
  // Predicated region
  $region2: #{forward.1} parent=0 // pred_check
    _
  $region3: #{forward.1} parent=0 // pred_check_branch
    %9 = sbr.rel (0) target = $region5
  $region4: #{forward.1} parent=0 // pred_region
    _
  $region5: #{forward.1} parent=0 // pred_fallthru
    _
  // Predicated region
  $region6: #{forward.1} parent=0 // pred_check
    _
  $region7: #{forward.1} parent=0 // pred_check_branch
    %11 = sbr.rel (0) target = $region9
  $region8: #{forward.1} parent=0 // pred_region
    _
  $region9: #{forward.1} parent=0 // pred_fallthru
    _
  // Predicated region
  $region10: #{forward.1} parent=0 // pred_check
    _
  $region11: #{forward.1} parent=0 // pred_check_branch
    %13 = sbr.rel (0) target = $region13
  $region12: #{forward.1} parent=0 // pred_region
    _
  $region13: #{forward.1} parent=0 // pred_fallthru
    _
  %p14 = scmp.eq.s32.totalorder 0, 0
  // Predicated region
  $region14: #{forward.1} parent=0 // pred_check
    %p15 = pneg %p14
  $region15: #{forward.1} parent=0 // pred_check_branch
    %17 = sbr.rel (%p15) target = $region17
  $region16: #{forward.1} parent=0 // pred_region
    %v18 = vld [vmem:[%s2] sm:$0xff]
    %v19 = vld [vmem:[%s2 + $0x8] sm:$0xff]
    %v20 = vld [vmem:[%s2 + $0x10] sm:$0xff]
    %v21 = vld [vmem:[%s2 + $0x18] sm:$0xff]
    %22 = vst [vmem:[%s3] sm:$0xff] %v18
    %23 = vst [vmem:[%s3 + $0x8] sm:$0xff] %v19
    %24 = vst [vmem:[%s3 + $0x10] sm:$0xff] %v20
    %25 = vst [vmem:[%s3 + $0x18] sm:$0xff] %v21
  $region17: #{forward.1} parent=0 // pred_fallthru
    _
  %v26 = vld [vmem:[%s3] sm:$0xff]
  %v27 = vld [vmem:[%s3 + $0x8] sm:$0xff]
  %v28 = vld [vmem:[%s3 + $0x10] sm:$0xff]
  %v29 = vld [vmem:[%s3 + $0x18] sm:$0xff]
  %v30 = vld [vmem:[%s0] sm:$0xff]
  %v31 = vld [vmem:[%s0 + $0x8] sm:$0xff]
  %v32 = vld [vmem:[%s0 + $0x10] sm:$0xff]
  %v33 = vld [vmem:[%s0 + $0x18] sm:$0xff]
  %v34 = vld [vmem:[%s1] sm:$0xff]
  %v35 = vld [vmem:[%s1 + $0x8] sm:$0xff]
  %v36 = vld [vmem:[%s1 + $0x10] sm:$0xff]
  %v37 = vld [vmem:[%s1 + $0x18] sm:$0xff]
  %v38 = vld [vmem:[%s1 + $0x20] sm:$0xff]
  %v39 = vld [vmem:[%s1 + $0x28] sm:$0xff]
  %v40 = vld [vmem:[%s1 + $0x30] sm:$0xff]
  %v41 = vld [vmem:[%s1 + $0x38] sm:$0xff]
  %v42 = vld [vmem:[%s1 + $0x40] sm:$0xff]
  %v43 = vld [vmem:[%s1 + $0x48] sm:$0xff]
  %v44 = vld [vmem:[%s1 + $0x50] sm:$0xff]
  %v45 = vld [vmem:[%s1 + $0x58] sm:$0xff]
  %v46 = vld [vmem:[%s1 + $0x60] sm:$0xff]
  %v47 = vld [vmem:[%s1 + $0x68] sm:$0xff]
  %v48 = vld [vmem:[%s1 + $0x70] sm:$0xff]
  %v49 = vld [vmem:[%s1 + $0x78] sm:$0xff]
  %50 = vmatpush.msra.mxu0 %v49
  %51 = vmatpush.msra.mxu0 %v48
  %52 = vmatpush.msra.mxu0 %v47
  %53 = vmatpush.msra.mxu0 %v46
  %54 = vmatpush.msra.mxu0 %v45
  %55 = vmatpush.msra.mxu0 %v44
  %56 = vmatpush.msra.mxu0 %v43
  %57 = vmatpush.msra.mxu0 %v42
  %58 = vmatpush.msra.mxu0 %v41
  %59 = vmatpush.msra.mxu0 %v40
  %60 = vmatpush.msra.mxu0 %v39
  %61 = vmatpush.msra.mxu0 %v38
  %62 = vmatpush.msra.mxu0 %v37
  %63 = vmatpush.msra.mxu0 %v36
  %64 = vmatpush.msra.mxu0 %v35
  %65 = vmatpush.msra.mxu0 %v34
  %66 = vmatmul.f32.gmra.mxu0 %v30
  %v67 = vpop.f32.mrf.mxu0
  %v68 = vadd.f32 0.0, %v67
  %69 = vmatmul.f32.gmra.mxu0 %v31
  %v70 = vpop.f32.mrf.mxu0
  %v71 = vadd.f32 0.0, %v70
  %72 = vmatmul.f32.gmra.mxu0 %v32
  %v73 = vpop.f32.mrf.mxu0
  %v74 = vadd.f32 0.0, %v73
  %75 = vmatmul.f32.gmra.mxu0 %v33
  %v76 = vpop.f32.mrf.mxu0
  %v77 = vadd.f32 0.0, %v76
  %78 = vdwg.mxu0
  %v79 = vadd.f32 %v26, %v68
  %v80 = vadd.f32 %v27, %v71
  %v81 = vadd.f32 %v28, %v74
  %v82 = vadd.f32 %v29, %v77
  %83 = vst [vmem:[%s3] sm:$0xff] %v79
  %84 = vst [vmem:[%s3 + $0x8] sm:$0xff] %v80
  %85 = vst [vmem:[%s3 + $0x10] sm:$0xff] %v81
  %86 = vst [vmem:[%s3 + $0x18] sm:$0xff] %v82
  // Predicated region
  $region18: #{forward.1} parent=0 // pred_check
    _
  $region19: #{forward.1} parent=0 // pred_check_branch
    %88 = sbr.rel (0) target = $region21
  $region20: #{forward.1} parent=0 // pred_region
    _
  $region21: #{forward.1} parent=0 // pred_fallthru
    _
  // Predicated region
  $region22: #{forward.1} parent=0 // pred_check
    _
  $region23: #{forward.1} parent=0 // pred_check_branch
    %90 = sbr.rel (0) target = $region25
  $region24: #{forward.1} parent=0 // pred_region
    _
  $region25: #{forward.1} parent=0 // pred_fallthru
    _

</llo_original>
